<compile_context>
chip_gen: v7x
topology: tpu7x:2x2x1
jax: 0.10.0
libtpu: 0.0.40
codegen_flags: <defaults>
</compile_context>

<pallas_src>
import functools

import jax
import jax.numpy as jnp
from jax.experimental import pallas as pl
from jax.experimental.pallas import tpu as pltpu

EPS = 1e-6


def _perf_policy_kernel(A, f_ref, i_ref, out_ref):
    # f_ref layout (1-D f32, SMEM):
    #   [0    , 2A)    : p0 rows (player row, then adversary row)
    #   [2A   , 4A)    : p1 rows
    #   [4A   , 4A+4)  : Bernoulli probs  p2_p, p2_a, p3_p, p3_a
    #   [4A+4 , 4A+7)  : delta, I, G_idx
    # i_ref layout (1-D i32, SMEM):
    #   c0_p, c0_a, c1_p, c1_a, c2_p, c2_a, c3_p, c3_a
    base_p1 = 2 * A
    base_b = 4 * A

    c0p = i_ref[0]
    c0a = i_ref[1]
    c1p = i_ref[2]
    c1a = i_ref[3]
    c2p = i_ref[4].astype(jnp.float32)
    c2a = i_ref[5].astype(jnp.float32)
    c3p = i_ref[6].astype(jnp.float32)
    c3a = i_ref[7].astype(jnp.float32)

    # Categorical heads: scalar dynamic-index picks straight from SMEM.
    pp = f_ref[c0p] * f_ref[base_p1 + c1p]
    pa = f_ref[A + c0a] * f_ref[base_p1 + A + c1a]

    # Bernoulli heads: (~c) + (2c - 1) * p  ==  p if c else (1 - p)
    p2p = f_ref[base_b + 0]
    p2a = f_ref[base_b + 1]
    p3p = f_ref[base_b + 2]
    p3a = f_ref[base_b + 3]
    pp = pp * ((1.0 - c2p) + (2.0 * c2p - 1.0) * p2p)
    pp = pp * ((1.0 - c3p) + (2.0 * c3p - 1.0) * p3p)
    pa = pa * ((1.0 - c2a) + (2.0 * c2a - 1.0) * p2a)
    pa = pa * ((1.0 - c3a) + (2.0 * c3a - 1.0) * p3a)

    pp = pp + EPS
    pa = pa + EPS

    delta = f_ref[base_b + 4]
    I = f_ref[base_b + 5]
    g = f_ref[base_b + 6]
    coef = I * delta * (1.0 - 2.0 * g)          # I * delta * (-2*G_idx + 1)

    # log((pp/pa)**expo) == expo * (log(pp) - log(pa)) ; two EUP logs on one vreg.
    pp_v = jnp.full((1, 1), pp, jnp.float32)
    pa_v = jnp.full((1, 1), pa, jnp.float32)
    out_ref[...] = coef * (jnp.log(pp_v) - jnp.log(pa_v))


def perf_policy(delta, I, actions_prob, actions_choice, G_idx):
    """Pallas-backed equivalent of PerfPolicy.forward.  Returns a scalar f32."""
    p0, p1, p2, p3 = actions_prob
    A = p0.shape[-1]

    fvals = jnp.concatenate([
        p0.astype(jnp.float32).reshape(-1),            # 2*A
        p1.astype(jnp.float32).reshape(-1),            # 2*A
        p2.astype(jnp.float32).reshape(-1),            # 2
        p3.astype(jnp.float32).reshape(-1),            # 2
        jnp.stack([jnp.asarray(delta, jnp.float32),
                   jnp.asarray(I, jnp.float32),
                   jnp.asarray(G_idx, jnp.float32)]),  # 3
    ])
    ivals = jnp.concatenate([
        actions_choice[0].astype(jnp.int32).reshape(-1),
        actions_choice[1].astype(jnp.int32).reshape(-1),
        actions_choice[2].astype(jnp.int32).reshape(-1),
        actions_choice[3].astype(jnp.int32).reshape(-1),
    ])

    smem = pl.BlockSpec(memory_space=pltpu.MemorySpace.SMEM)
    vmem = pl.BlockSpec(memory_space=pltpu.MemorySpace.VMEM)

    out = pl.pallas_call(
        functools.partial(_perf_policy_kernel, A),
        out_shape=jax.ShapeDtypeStruct((1, 1), jnp.float32),
        in_specs=[smem, smem],
        out_specs=vmem,
    )(fvals, ivals)
    return out[0, 0]


def perf_policy_ref(delta, I, actions_prob, actions_choice, G_idx):
    """Pure-JAX reference mirroring the PyTorch forward exactly."""
    pp = 1.0
    pa = 1.0
    for i in range(2):
        pp = pp * actions_prob[i][0, actions_choice[i][0]]
        pa = pa * actions_prob[i][1, actions_choice[i][1]]
    for i in range(2, 4):
        c_p = actions_choice[i][0]
        c_a = actions_choice[i][1]
        pp = pp * ((~c_p).astype(jnp.float32)
                   + (2 * c_p.astype(jnp.int32) - 1) * actions_prob[i][0])
        pa = pa * ((~c_a).astype(jnp.float32)
                   + (2 * c_a.astype(jnp.int32) - 1) * actions_prob[i][1])
    pp = pp + EPS
    pa = pa + EPS
    perf = jnp.log((pp / pa) ** (-2.0 * G_idx + 1.0))
    return I * delta * perf


if __name__ == "__main__":
    A = 8  # number of discrete actions for the two categorical heads
    key = jax.random.PRNGKey(0)
    k0, k1, k2, k3, k4, k5, k6, k7 = jax.random.split(key, 8)

    # actions_prob: two categorical heads (2 players x A actions), two Bernoulli heads (2 players)
    p0 = jax.nn.softmax(jax.random.normal(k0, (2, A)), axis=-1)
    p1 = jax.nn.softmax(jax.random.normal(k1, (2, A)), axis=-1)
    p2 = jax.nn.sigmoid(jax.random.normal(k2, (2,)))
    p3 = jax.nn.sigmoid(jax.random.normal(k3, (2,)))
    actions_prob = (p0, p1, p2, p3)

    # actions_choice: two index choices (int), two binary choices (bool)
    c0 = jax.random.randint(k4, (2,), 0, A)
    c1 = jax.random.randint(k5, (2,), 0, A)
    c2 = jax.random.bernoulli(k6, 0.5, (2,))
    c3 = jax.random.bernoulli(k7, 0.5, (2,))
    actions_choice = [c0, c1, c2, c3]

    delta = jnp.float32(0.7)          # no-grad TD error
    I = jnp.float32(0.99 ** 3)        # gamma ** t
    G_idx = jnp.float32(1.0)          # which player's return is being optimized

    out = perf_policy(delta, I, actions_prob, actions_choice, G_idx)
    out = jax.block_until_ready(out)

    ref = perf_policy_ref(delta, I, actions_prob, actions_choice, G_idx)
    assert jnp.allclose(out, ref, atol=1e-5, rtol=1e-5), (out, ref)

    print("KERNEL_OK")
</pallas_src>

<mosaic_0001>
module attributes {stable_mosaic.version = 11 : i64} {
  func.func @_perf_policy_kernel(%arg0: memref<39xf32, #tpu.memory_space<smem>>, %arg1: memref<8xi32, #tpu.memory_space<smem>>, %arg2: memref<1x1xf32, #tpu.memory_space<vmem>>) attributes {dimension_semantics = [], scalar_prefetch = 0 : i64, scratch_operands = 0 : i64, tpu.core_type = #tpu.core_type<tc>} {
    %c0 = arith.constant 0 : index
    %0 = memref.load %arg1[%c0] : memref<8xi32, #tpu.memory_space<smem>>
    %c1 = arith.constant 1 : index
    %1 = memref.load %arg1[%c1] : memref<8xi32, #tpu.memory_space<smem>>
    %c2 = arith.constant 2 : index
    %2 = memref.load %arg1[%c2] : memref<8xi32, #tpu.memory_space<smem>>
    %c3 = arith.constant 3 : index
    %3 = memref.load %arg1[%c3] : memref<8xi32, #tpu.memory_space<smem>>
    %c4 = arith.constant 4 : index
    %4 = memref.load %arg1[%c4] : memref<8xi32, #tpu.memory_space<smem>>
    %5 = arith.sitofp %4 : i32 to f32
    %c5 = arith.constant 5 : index
    %6 = memref.load %arg1[%c5] : memref<8xi32, #tpu.memory_space<smem>>
    %7 = arith.sitofp %6 : i32 to f32
    %c6 = arith.constant 6 : index
    %8 = memref.load %arg1[%c6] : memref<8xi32, #tpu.memory_space<smem>>
    %9 = arith.sitofp %8 : i32 to f32
    %c7 = arith.constant 7 : index
    %10 = memref.load %arg1[%c7] : memref<8xi32, #tpu.memory_space<smem>>
    %11 = arith.sitofp %10 : i32 to f32
    %12 = arith.index_cast %0 : i32 to index
    %13 = memref.load %arg0[%12] : memref<39xf32, #tpu.memory_space<smem>>
    %c16_i32 = arith.constant 16 : i32
    %14 = arith.addi %c16_i32, %2 : i32
    %15 = arith.index_cast %14 : i32 to index
    %16 = memref.load %arg0[%15] : memref<39xf32, #tpu.memory_space<smem>>
    %17 = arith.mulf %13, %16 : f32
    %c8_i32 = arith.constant 8 : i32
    %18 = arith.addi %c8_i32, %1 : i32
    %19 = arith.index_cast %18 : i32 to index
    %20 = memref.load %arg0[%19] : memref<39xf32, #tpu.memory_space<smem>>
    %c24_i32 = arith.constant 24 : i32
    %21 = arith.addi %c24_i32, %3 : i32
    %22 = arith.index_cast %21 : i32 to index
    %23 = memref.load %arg0[%22] : memref<39xf32, #tpu.memory_space<smem>>
    %24 = arith.mulf %20, %23 : f32
    %c32 = arith.constant 32 : index
    %25 = memref.load %arg0[%c32] : memref<39xf32, #tpu.memory_space<smem>>
    %c33 = arith.constant 33 : index
    %26 = memref.load %arg0[%c33] : memref<39xf32, #tpu.memory_space<smem>>
    %c34 = arith.constant 34 : index
    %27 = memref.load %arg0[%c34] : memref<39xf32, #tpu.memory_space<smem>>
    %c35 = arith.constant 35 : index
    %28 = memref.load %arg0[%c35] : memref<39xf32, #tpu.memory_space<smem>>
    %cst = arith.constant 1.000000e+00 : f32
    %29 = arith.subf %cst, %5 : f32
    %cst_0 = arith.constant 2.000000e+00 : f32
    %30 = arith.mulf %cst_0, %5 : f32
    %cst_1 = arith.constant 1.000000e+00 : f32
    %31 = arith.subf %30, %cst_1 : f32
    %32 = arith.mulf %31, %25 : f32
    %33 = arith.addf %29, %32 : f32
    %34 = arith.mulf %17, %33 : f32
    %cst_2 = arith.constant 1.000000e+00 : f32
    %35 = arith.subf %cst_2, %9 : f32
    %cst_3 = arith.constant 2.000000e+00 : f32
    %36 = arith.mulf %cst_3, %9 : f32
    %cst_4 = arith.constant 1.000000e+00 : f32
    %37 = arith.subf %36, %cst_4 : f32
    %38 = arith.mulf %37, %27 : f32
    %39 = arith.addf %35, %38 : f32
    %40 = arith.mulf %34, %39 : f32
    %cst_5 = arith.constant 1.000000e+00 : f32
    %41 = arith.subf %cst_5, %7 : f32
    %cst_6 = arith.constant 2.000000e+00 : f32
    %42 = arith.mulf %cst_6, %7 : f32
    %cst_7 = arith.constant 1.000000e+00 : f32
    %43 = arith.subf %42, %cst_7 : f32
    %44 = arith.mulf %43, %26 : f32
    %45 = arith.addf %41, %44 : f32
    %46 = arith.mulf %24, %45 : f32
    %cst_8 = arith.constant 1.000000e+00 : f32
    %47 = arith.subf %cst_8, %11 : f32
    %cst_9 = arith.constant 2.000000e+00 : f32
    %48 = arith.mulf %cst_9, %11 : f32
    %cst_10 = arith.constant 1.000000e+00 : f32
    %49 = arith.subf %48, %cst_10 : f32
    %50 = arith.mulf %49, %28 : f32
    %51 = arith.addf %47, %50 : f32
    %52 = arith.mulf %46, %51 : f32
    %cst_11 = arith.constant 9.99999997E-7 : f32
    %53 = arith.addf %40, %cst_11 : f32
    %cst_12 = arith.constant 9.99999997E-7 : f32
    %54 = arith.addf %52, %cst_12 : f32
    %c36 = arith.constant 36 : index
    %55 = memref.load %arg0[%c36] : memref<39xf32, #tpu.memory_space<smem>>
    %c37 = arith.constant 37 : index
    %56 = memref.load %arg0[%c37] : memref<39xf32, #tpu.memory_space<smem>>
    %c38 = arith.constant 38 : index
    %57 = memref.load %arg0[%c38] : memref<39xf32, #tpu.memory_space<smem>>
    %58 = arith.mulf %56, %55 : f32
    %cst_13 = arith.constant 2.000000e+00 : f32
    %59 = arith.mulf %cst_13, %57 : f32
    %cst_14 = arith.constant 1.000000e+00 : f32
    %60 = arith.subf %cst_14, %59 : f32
    %61 = arith.mulf %58, %60 : f32
    %62 = vector.broadcast %53 : f32 to vector<1x1xf32>
    %63 = vector.broadcast %54 : f32 to vector<1x1xf32>
    %64 = math.log %62 : vector<1x1xf32>
    %65 = math.log %63 : vector<1x1xf32>
    %66 = arith.subf %64, %65 : vector<1x1xf32>
    %67 = vector.broadcast %61 : f32 to vector<1x1xf32>
    %68 = arith.mulf %67, %66 : vector<1x1xf32>
    %c0_15 = arith.constant 0 : index
    %c0_16 = arith.constant 0 : index
    %69 = vector.load %arg2[%c0_15, %c0_16] : memref<1x1xf32, #tpu.memory_space<vmem>>, vector<1x1xf32>
    tpu.vector_store %arg2[%c0_15, %c0_16], %68 {strides = array<i32>} : memref<1x1xf32, #tpu.memory_space<vmem>>, vector<1x1xf32>,
    return
  }
}

</mosaic_0001>

<llo_original>
// kernel: tpu_custom_call.1
$region0: #{tpu_custom_call.1}
  #allocation0 [shape = 'u32[]', space=smem, size = 0x4, offset = 0x4, fixed_abs, tag = 'smem constant byte address 0x4 - core index']
  #allocation1 [shape = 'u32[144,128]{1,0:T(1,128)}', space=vmem, size = 0x12000, scoped, tag = 'internal scratch']
  %s0 = inlined_call_operand.hbm [shape: f32[39], index: 0, kind: input, shape index: {}]
  %s1 = inlined_call_operand.vmem [shape: s32[8], index: 1, kind: input, shape index: {}]
  %s2 = inlined_call_operand.hbm [shape: f32[1,1], index: 2, kind: output, shape index: {}]
  %s3 = sld [smem:[#allocation0]]
  $region26: #{tpu_custom_call.1} parent=0
    _
  %s5 = ssub.s32 1, %s3
  %s6 = scalar_select 0, %s5, %s3
  $region1: #{tpu_custom_call.1} parent=0
    #allocation2 [shape = 'u8[512]{0}', space=smem, size = 0x200, scoped, tag = 'input window, operand 0, single buffered']
    #allocation3 [shape = 's32[1]{0}', space=sflag, size = 0x4, scoped, tag = 'scoped memory for tpu_custom_call.1']
    #allocation4 [shape = 's32[1]{0}', space=sflag, size = 0x4, scoped, tag = 'scoped memory for tpu_custom_call.1']
    #allocation5 [shape = 's32[1]{0}', space=sflag, size = 0x4, scoped, tag = 'scoped memory for tpu_custom_call.1']
    #allocation6 [shape = 'u8[512]{0}', space=smem, size = 0x200, scoped, tag = 'input window, operand 1, single buffered']
    #allocation7 [shape = 'u8[512]{0}', space=vmem, size = 0x400, scoped, tag = 'output window, operand 0, single buffered']
    %7 = vsyncpa [#allocation4], 0
    %8 = vsyncpa [#allocation5], 0
    %9 = vsyncpa [#allocation3], 0
    // Predicated region
    $region2: #{tpu_custom_call.1} parent=1 // pred_check
      _
    $region3: #{tpu_custom_call.1} parent=1 // pred_check_branch
      %11 = sbr.rel (0) target = $region5
    $region4: #{tpu_custom_call.1} parent=1 // pred_region
      %s13 = ssub.s32 16, 16
      %14 = vsyncadd [#allocation4], %s13
      %17 = dma.hbm_to_smem %s0, 16, [#allocation2], [#allocation4]
    $region5: #{tpu_custom_call.1} parent=1 // pred_fallthru
      _
    // Predicated region
    $region6: #{tpu_custom_call.1} parent=1 // pred_check
      _
    $region7: #{tpu_custom_call.1} parent=1 // pred_check_branch
      %19 = sbr.rel (0) target = $region9
    $region8: #{tpu_custom_call.1} parent=1 // pred_region
      %s21 = ssub.s32 16, 16
      %22 = vsyncadd [#allocation5], %s21
      %s24 = sshll.u32 %s1, 4
      %s25 = int_to_ptr.vmem [resolvable:$true] %s24
      %27 = dma.vmem_to_smem %s25, 16, [#allocation6], [#allocation5]
    $region9: #{tpu_custom_call.1} parent=1 // pred_fallthru
      _
    // Predicated region
    $region10: #{tpu_custom_call.1} parent=1 // pred_check
      _
    $region11: #{tpu_custom_call.1} parent=1 // pred_check_branch
      %29 = sbr.rel (0) target = $region13
    $region12: #{tpu_custom_call.1} parent=1 // pred_region
      %30 = dma.done [#allocation4], 16
    $region13: #{tpu_custom_call.1} parent=1 // pred_fallthru
      _
    // Predicated region
    $region14: #{tpu_custom_call.1} parent=1 // pred_check
      _
    $region15: #{tpu_custom_call.1} parent=1 // pred_check_branch
      %32 = sbr.rel (0) target = $region17
    $region16: #{tpu_custom_call.1} parent=1 // pred_region
      %33 = dma.done [#allocation5], 16
    $region17: #{tpu_custom_call.1} parent=1 // pred_fallthru
      _
    %34 = sfence
    %s35 = sld [smem:[#allocation6]]
    %s36 = sld [smem:[#allocation6 + $0x1]]
    %s37 = sld [smem:[#allocation6 + $0x2]]
    %s38 = sld [smem:[#allocation6 + $0x3]]
    %s39 = sld [smem:[#allocation6 + $0x4]]
    %s40 = scvt.s32.f32 %s39
    %s41 = sld [smem:[#allocation6 + $0x5]]
    %s42 = scvt.s32.f32 %s41
    %s43 = sld [smem:[#allocation6 + $0x6]]
    %s44 = scvt.s32.f32 %s43
    %s45 = sld [smem:[#allocation6 + $0x7]]
    %s46 = scvt.s32.f32 %s45
    %s47 = sld [smem:[#allocation2 + %s35]]
    %s48 = sadd.s32 %s37, 16
    %s49 = sld [smem:[#allocation2 + %s48]]
    %s50 = smul.f32 %s47, %s49
    %s51 = sadd.s32 %s36, 8
    %s52 = sld [smem:[#allocation2 + %s51]]
    %s53 = sadd.s32 %s38, 24
    %s54 = sld [smem:[#allocation2 + %s53]]
    %s55 = smul.f32 %s52, %s54
    %s56 = sld [smem:[#allocation2 + $0x20]]
    %s57 = sld [smem:[#allocation2 + $0x21]]
    %s58 = sld [smem:[#allocation2 + $0x22]]
    %s59 = sld [smem:[#allocation2 + $0x23]]
    %s60 = ssub.f32 1.0, %s40
    %s61 = smul.f32 %s40, 2.0
    %s62 = ssub.f32 %s61, 1.0
    %s63 = smul.f32 %s62, %s56
    %s64 = sadd.f32 %s60, %s63
    %s65 = smul.f32 %s50, %s64
    %s66 = ssub.f32 1.0, %s44
    %s67 = smul.f32 %s44, 2.0
    %s68 = ssub.f32 %s67, 1.0
    %s69 = smul.f32 %s68, %s58
    %s70 = sadd.f32 %s66, %s69
    %s71 = smul.f32 %s65, %s70
    %s72 = ssub.f32 1.0, %s42
    %s73 = smul.f32 %s42, 2.0
    %s74 = ssub.f32 %s73, 1.0
    %s75 = smul.f32 %s74, %s57
    %s76 = sadd.f32 %s72, %s75
    %s77 = smul.f32 %s55, %s76
    %s78 = ssub.f32 1.0, %s46
    %s79 = smul.f32 %s46, 2.0
    %s80 = ssub.f32 %s79, 1.0
    %s81 = smul.f32 %s80, %s59
    %s82 = sadd.f32 %s78, %s81
    %s83 = smul.f32 %s77, %s82
    %s84 = sadd.f32 %s71, 1e-06
    %s85 = sadd.f32 %s83, 1e-06
    %s86 = sld [smem:[#allocation2 + $0x24]]
    %s87 = sld [smem:[#allocation2 + $0x25]]
    %s88 = sld [smem:[#allocation2 + $0x26]]
    %s89 = smul.f32 %s87, %s86
    %s90 = smul.f32 %s88, 2.0
    %s91 = ssub.f32 1.0, %s90
    %s92 = smul.f32 %s89, %s91
    %v93 = vstv %s84
    %v94 = vstv %s85
    %v95 = vlog2.pop %v93
    %v96 = vmul.f32 %v95, 0.6931472
    %v97 = vlog2.pop %v94
    %v98 = vmul.f32 %v97, 0.6931472
    %v99 = vsub.f32 %v96, %v98
    %v100 = vstv %s92
    %v101 = vmul.f32 %v100, %v99
    %vm102 = vcmask 0
    %103 = vst.msk [vmem:[#allocation7] sm:$0x1] %vm102, %v101
    // Predicated region
    $region18: #{tpu_custom_call.1} parent=1 // pred_check
      _
    $region19: #{tpu_custom_call.1} parent=1 // pred_check_branch
      %105 = sbr.rel (0) target = $region21
    $region20: #{tpu_custom_call.1} parent=1 // pred_region
      %s107 = ssub.s32 16, 16
      %108 = vsyncadd [#allocation3], %s107
      %s110 = sshll.u32 [#allocation7], 4
      %s111 = int_to_ptr.vmem [resolvable:$true] %s110
      %113 = dma.vmem_to_hbm [thread:$0]  %s111, 16, %s2, [#allocation3]
    $region21: #{tpu_custom_call.1} parent=1 // pred_fallthru
      _
    // Predicated region
    $region22: #{tpu_custom_call.1} parent=1 // pred_check
      _
    $region23: #{tpu_custom_call.1} parent=1 // pred_check_branch
      %115 = sbr.rel (0) target = $region25
    $region24: #{tpu_custom_call.1} parent=1 // pred_region
      %116 = dma.done [#allocation3], 16
    $region25: #{tpu_custom_call.1} parent=1 // pred_fallthru
      _
    %117 = vsyncpa [#allocation3], 1
    %118 = vsyncpa [#allocation4], 1
    %119 = vsyncpa [#allocation5], 1

</llo_original>
